<compile_context>
chip_gen: v5e
topology: v5e:2x2
jax: 0.10.0
libtpu: 0.0.40
codegen_flags: <defaults>
</compile_context>

<pallas_src>
import jax
import jax.numpy as jnp
from jax.experimental import pallas as pl
from jax.experimental.pallas import tpu as pltpu

_LANES = 128                      # last dim -> 128-lane vreg axis (unmasked vst)
_MIN_ROW_TILE = 256               # amortize per-step overhead; multiple of 8/16/32 sublanes
_TARGET_GRID_STEPS = 8            # enough steps for pipeline overlap + both v7x TCs
_SMALL_FALLBACK_BYTES = 128 * 1024
_INV_SQRT2 = 0.7071067811865476


def _round_up(v, m):
    return ((v + m - 1) // m) * m


def _pick_max_block_bytes():
    # v7x: 3.2 TB/s HBM makes a 2 MiB block's DMA ~1.2us/step, so the ~0.35us fixed
    # per-grid-step cost is significant -> use 4 MiB blocks there.
    # v5e/v6e: HBM saturates at ~1-2 MiB blocks and v5e's default scoped VMEM is 16 MiB,
    # so stay at 2 MiB.
    try:
        kind = jax.devices()[0].device_kind.lower()
    except Exception:
        kind = ""
    if "v7" in kind or "7x" in kind:
        return 4 * 1024 * 1024
    return 2 * 1024 * 1024


def _gelu_jnp(x):
    """Pure-jnp exact GELU (reference + small-input / tail fallback)."""
    xf = x.astype(jnp.float32)
    return (xf * 0.5 * (1.0 + jax.lax.erf(xf * _INV_SQRT2))).astype(x.dtype)


def _gelu_kernel(x_ref, o_ref):
    x = x_ref[...]
    xf = x.astype(jnp.float32)
    # exact GELU (matches torch.nn.functional.gelu default / ACT2FN["gelu"])
    gate = 0.5 * (1.0 + jax.lax.erf(xf * _INV_SQRT2))
    if x.dtype == jnp.float32:
        o_ref[...] = xf * gate
    else:
        # bf16/fp16: keep the cheap multiply in the native dtype (bf16-capable VALU on
        # v6e/v7x); only the erf itself runs in f32 for precision.
        o_ref[...] = (x * gate.astype(x.dtype)).astype(o_ref.dtype)


def _gelu_pallas_slab(slab, rows, itemsize):
    """Run the kernel over a contiguous (rows, 128) lane-dense slab."""
    sublane = max(8, 32 // itemsize)            # 8 for f32, 16 for bf16, 32 for int8/fp8
    max_block_bytes = _pick_max_block_bytes()
    max_rows = max(sublane,
                   (max_block_bytes // (_LANES * itemsize)) // sublane * sublane)

    # Target >= _TARGET_GRID_STEPS steps so DMA-in / compute / DMA-out overlap and both
    # v7x TensorCores participate, but never go below _MIN_ROW_TILE rows per step and
    # never exceed the per-chip block-size cap.
    row_tile = _round_up(pl.cdiv(rows, _TARGET_GRID_STEPS), sublane)
    row_tile = min(max(row_tile, _MIN_ROW_TILE), max_rows)
    row_tile = min(row_tile, _round_up(rows, sublane))   # no bigger than the array needs
    grid = (pl.cdiv(rows, row_tile),)                    # ragged last block is masked

    return pl.pallas_call(
        _gelu_kernel,
        out_shape=jax.ShapeDtypeStruct((rows, _LANES), slab.dtype),
        grid_spec=pltpu.PrefetchScalarGridSpec(
            num_scalar_prefetch=0,
            grid=grid,
            in_specs=[pl.BlockSpec((row_tile, _LANES), lambda i: (i, 0))],
            out_specs=pl.BlockSpec((row_tile, _LANES), lambda i: (i, 0)),
        ),
        compiler_params=pltpu.CompilerParams(
            # "parallel" is the documented megacore sharding mechanism.
            # TODO(synk): verify on a v7x trace that both TCs pick up grid steps; if not,
            # switch this axis to pltpu.CORE_PARALLEL.
            dimension_semantics=("parallel",),
            # Explicit scoped-VMEM budget: 4 live buffers x <=4 MiB = 16 MiB, +headroom.
            # 32 MiB is safe on every generation (v5e/v6e physical 128 MiB, v7x 64 MiB).
            vmem_limit_bytes=32 * 1024 * 1024,
        ),
    )(slab)


def euclidean_transformer_activation(x, *, min_pallas_bytes=_SMALL_FALLBACK_BYTES):
    """Elementwise exact GELU via a Pallas TPU kernel. Works for any input shape/dtype."""
    orig_shape = x.shape
    n = x.size
    itemsize = jnp.dtype(x.dtype).itemsize

    if n == 0:
        return x
    if n * itemsize < min_pallas_bytes:
        # Tiny activations: kernel dispatch + per-step overhead dwarfs roofline time.
        return _gelu_jnp(x)

    flat = x.reshape(-1)
    n_main = (n // _LANES) * _LANES
    if n_main == 0:
        return _gelu_jnp(x)

    if n_main == n:
        # Common case: numel is 128-aligned -> free reshape, zero extra HBM traffic.
        slab = flat.reshape(-1, _LANES)
        out = _gelu_pallas_slab(slab, slab.shape[0], itemsize)
        return out.reshape(orig_shape)

    # Ragged numel: kernel on the 128-aligned prefix, plain jnp on the <128-element tail
    # (avoids the full-array jnp.pad + post-slice passes).
    slab = flat[:n_main].reshape(-1, _LANES)
    out_main = _gelu_pallas_slab(slab, slab.shape[0], itemsize)
    tail = _gelu_jnp(flat[n_main:])
    return jnp.concatenate([out_main.reshape(-1), tail]).reshape(orig_shape)


if __name__ == "__main__":
    key = jax.random.PRNGKey(0)
    k0, k1, k2, k3 = jax.random.split(key, 4)

    # Small NCHW-style example consistent with a transformer/conv feature-map activation.
    x_small = jax.random.normal(k0, (2, 4, 16, 16), dtype=jnp.float32)
    ref_small = _gelu_jnp(x_small)

    # Default path (small-input jnp fallback).
    y_small = jax.block_until_ready(euclidean_transformer_activation(x_small))
    # Forced Pallas path so the kernel itself runs on the small PRNGKey(0) input too.
    y_small_k = jax.block_until_ready(
        euclidean_transformer_activation(x_small, min_pallas_bytes=0))
    assert y_small.shape == x_small.shape and y_small.dtype == x_small.dtype
    assert jnp.allclose(y_small, ref_small, atol=1e-5, rtol=1e-5)
    assert jnp.allclose(y_small_k, ref_small, atol=1e-5, rtol=1e-5)

    # Multi-step pipelined grid, 128-aligned numel.
    x_big = jax.random.normal(k1, (4, 8, 128, 128), dtype=jnp.float32)
    y_big = jax.block_until_ready(euclidean_transformer_activation(x_big))
    assert jnp.allclose(y_big, _gelu_jnp(x_big), atol=1e-5, rtol=1e-5)

    # Ragged rows (masked last block) + non-128-aligned numel (jnp tail).
    x_rag = jax.random.normal(k2, (2, 9, 33, 67), dtype=jnp.float32)
    y_rag = jax.block_until_ready(euclidean_transformer_activation(x_rag))
    assert y_rag.shape == x_rag.shape
    assert jnp.allclose(y_rag, _gelu_jnp(x_rag), atol=1e-5, rtol=1e-5)

    # bf16 path (native-dtype multiply, f32 erf).
    x_bf = jax.random.normal(k3, (4, 8, 128, 128), dtype=jnp.bfloat16)
    y_bf = jax.block_until_ready(euclidean_transformer_activation(x_bf))
    assert y_bf.dtype == jnp.bfloat16
    assert jnp.allclose(y_bf.astype(jnp.float32),
                        _gelu_jnp(x_bf).astype(jnp.float32), atol=3e-2, rtol=3e-2)

    print("KERNEL_OK")
</pallas_src>

<mosaic_0001>
module attributes {stable_mosaic.version = 11 : i64} {
  func.func @_gelu_kernel(%arg0: i32, %arg1: memref<16x128xf32, #tpu.memory_space<vmem>>, %arg2: memref<16x128xf32, #tpu.memory_space<vmem>>) attributes {dimension_semantics = [#tpu.dimension_semantics<parallel>], iteration_bounds = array<i64: 1>, scalar_prefetch = 0 : i64, scratch_operands = 0 : i64, tpu.core_type = #tpu.core_type<tc>, window_params = [{transform_indices = @transform_0, window_bounds = array<i64: 16, 128>}, {transform_indices = @transform_1, window_bounds = array<i64: 16, 128>}]} {
    %c0 = arith.constant 0 : index
    %c0_0 = arith.constant 0 : index
    %0 = vector.load %arg1[%c0, %c0_0] : memref<16x128xf32, #tpu.memory_space<vmem>>, vector<16x128xf32>
    %cst = arith.constant 0.707106769 : f32
    %1 = vector.broadcast %cst : f32 to vector<16x128xf32>
    %2 = arith.mulf %0, %1 : vector<16x128xf32>
    %3 = math.erf %2 : vector<16x128xf32>
    %cst_1 = arith.constant 1.000000e+00 : f32
    %4 = vector.broadcast %cst_1 : f32 to vector<16x128xf32>
    %5 = arith.addf %4, %3 : vector<16x128xf32>
    %cst_2 = arith.constant 5.000000e-01 : f32
    %6 = vector.broadcast %cst_2 : f32 to vector<16x128xf32>
    %7 = arith.mulf %6, %5 : vector<16x128xf32>
    %8 = arith.mulf %0, %7 : vector<16x128xf32>
    %c0_3 = arith.constant 0 : index
    %c0_4 = arith.constant 0 : index
    %9 = vector.load %arg2[%c0_3, %c0_4] : memref<16x128xf32, #tpu.memory_space<vmem>>, vector<16x128xf32>
    tpu.vector_store %arg2[%c0_3, %c0_4], %8 {strides = array<i32>} : memref<16x128xf32, #tpu.memory_space<vmem>>, vector<16x128xf32>,
    return
  }
  func.func @transform_0(%arg0: i32) -> (i32, i32) {
    %c0_i32 = arith.constant 0 : i32
    %c0_i32_0 = arith.constant 0 : i32
    return %arg0, %c0_i32 : i32, i32
  }
  func.func @transform_1(%arg0: i32) -> (i32, i32) {
    %c0_i32 = arith.constant 0 : i32
    %c0_i32_0 = arith.constant 0 : i32
    return %arg0, %c0_i32 : i32, i32
  }
}

</mosaic_0001>

<llo_original>
// kernel: tpu_custom_call.1
$region0: #{tpu_custom_call.1}
  #allocation0 [shape = 'u32[]', space=smem, size = 0x4, offset = 0x4, fixed_abs, tag = 'smem constant byte address 0x4 - core index']
  #allocation1 [shape = 'u32[72,128]{1,0:T(1,128)}', space=vmem, size = 0x9000, scoped, tag = 'internal scratch']
  %s0 = inlined_call_operand.hbm [shape: f32[16,128], index: 0, kind: input, shape index: {}]
  %s1 = inlined_call_operand.hbm [shape: f32[16,128], index: 1, kind: output, shape index: {}]
  %s2 = sld [smem:[#allocation0]]
  $region18: #{tpu_custom_call.1} parent=0
    _
  %s4 = ssub.s32 1, %s2
  %s5 = scalar_select 0, %s4, %s2
  $region1: #{tpu_custom_call.1} parent=0
    #allocation2 [shape = 'u8[8192]{0}', space=vmem, size = 0x2000, scoped, tag = 'input window, operand 0, single buffered']
    #allocation3 [shape = 's32[1]{0}', space=sflag, size = 0x4, scoped, tag = 'scoped memory for tpu_custom_call.1']
    #allocation4 [shape = 's32[1]{0}', space=sflag, size = 0x4, scoped, tag = 'scoped memory for tpu_custom_call.1']
    #allocation5 [shape = 'u8[8192]{0}', space=vmem, size = 0x2000, scoped, tag = 'output window, operand 0, single buffered']
    %6 = vsyncpa [#allocation3], 0
    %7 = vsyncpa [#allocation4], 0
    // Predicated region
    $region2: #{tpu_custom_call.1} parent=1 // pred_check
      _
    $region3: #{tpu_custom_call.1} parent=1 // pred_check_branch
      %9 = sbr.rel (0) target = $region5
    $region4: #{tpu_custom_call.1} parent=1 // pred_region
      %11 = vsyncadd [#allocation3], 0
      %s12 = sshll.u32 %s0, 4
      %s13 = int_to_ptr.hbm [resolvable:$true] %s12
      %s14 = sshll.u32 [#allocation2], 4
      %s15 = int_to_ptr.vmem [resolvable:$true] %s14
      %20 = dma.hbm_to_vmem [thread:$0]  %s13, 256, %s15, [#allocation3], 128, 128, 8
    $region5: #{tpu_custom_call.1} parent=1 // pred_fallthru
      _
    // Predicated region
    $region6: #{tpu_custom_call.1} parent=1 // pred_check
      _
    $region7: #{tpu_custom_call.1} parent=1 // pred_check_branch
      %22 = sbr.rel (0) target = $region9
    $region8: #{tpu_custom_call.1} parent=1 // pred_region
      %24 = dma.done [#allocation3], 256
    $region9: #{tpu_custom_call.1} parent=1 // pred_fallthru
      _
    %v25 = vld [vmem:[#allocation2] sm:$0xff]
    %v26 = vld [vmem:[#allocation2 + $0x8] sm:$0xff]
    %v27 = vmul.f32 %v25, 0.70710677
    %v28 = vmul.f32 %v26, 0.70710677
    %v29 = vmul.f32 %v27, %v27
    %v30 = vmin.f32 16.0, %v29
    %v31 = vmul.f32 %v30, 2.1237322e-06
    %v32 = vadd.f32 %v31, 0.00028619796
    %v33 = vmul.f32 %v30, %v32
    %v34 = vadd.f32 %v33, 0.0036580483
    %v35 = vmul.f32 %v30, %v34
    %v36 = vadd.f32 %v35, 0.05243302
    %v37 = vmul.f32 %v30, %v36
    %v38 = vadd.f32 %v37, 0.18741608
    %v39 = vmul.f32 %v30, %v38
    %v40 = vadd.f32 %v39, 1.1283791
    %v41 = vmul.f32 %v27, %v40
    %v42 = vmul.f32 %v30, 3.8918573e-05
    %v43 = vadd.f32 %v42, 0.001143296
    %v44 = vmul.f32 %v30, %v43
    %v45 = vadd.f32 %v44, 0.014752088
    %v46 = vmul.f32 %v30, %v45
    %v47 = vadd.f32 %v46, 0.112945676
    %v48 = vmul.f32 %v30, %v47
    %v49 = vadd.f32 %v48, 0.4994258
    %v50 = vmul.f32 %v30, %v49
    %v51 = vadd.f32 %v50, 1.0
    %v52 = vrcp.pop %v51
    %v53 = vmul.f32 %v51, %v52
    %v54 = vsub.f32 1.0, %v53
    %v55 = vmul.f32 %v52, %v54
    %v56 = vadd.f32 %v52, %v55
    %vm57 = vweird.f32 %v51
    %vm58 = vweird.f32 %v52
    %vm59 = vmor %vm57, %vm58
    %v60 = vsel %vm59, %v52, %v56
    %v61 = vand.u32 2147483647, %v51
    %vm62 = vcmp.eq.f32.partialorder %v61, 8.507059e+37
    %v63 = vand.u32 %v51, 2147483648
    %v64 = vor.u32 1.1754944e-38, %v63
    %v65 = vsel %vm62, %v64, %v60
    %v66 = vmul.f32 %v41, %v65
    %v67 = vmin.f32 %v66, 1.0
    %v68 = vmax.f32 %v67, -1.0
    %v69 = vmul.f32 %v28, %v28
    %v70 = vmin.f32 16.0, %v69
    %v71 = vmul.f32 %v70, 2.1237322e-06
    %v72 = vadd.f32 %v71, 0.00028619796
    %v73 = vmul.f32 %v70, %v72
    %v74 = vadd.f32 %v73, 0.0036580483
    %v75 = vmul.f32 %v70, %v74
    %v76 = vadd.f32 %v75, 0.05243302
    %v77 = vmul.f32 %v70, %v76
    %v78 = vadd.f32 %v77, 0.18741608
    %v79 = vmul.f32 %v70, %v78
    %v80 = vadd.f32 %v79, 1.1283791
    %v81 = vmul.f32 %v28, %v80
    %v82 = vmul.f32 %v70, 3.8918573e-05
    %v83 = vadd.f32 %v82, 0.001143296
    %v84 = vmul.f32 %v70, %v83
    %v85 = vadd.f32 %v84, 0.014752088
    %v86 = vmul.f32 %v70, %v85
    %v87 = vadd.f32 %v86, 0.112945676
    %v88 = vmul.f32 %v70, %v87
    %v89 = vadd.f32 %v88, 0.4994258
    %v90 = vmul.f32 %v70, %v89
    %v91 = vadd.f32 %v90, 1.0
    %v92 = vrcp.pop %v91
    %v93 = vmul.f32 %v91, %v92
    %v94 = vsub.f32 1.0, %v93
    %v95 = vmul.f32 %v92, %v94
    %v96 = vadd.f32 %v92, %v95
    %vm97 = vweird.f32 %v91
    %vm98 = vweird.f32 %v92
    %vm99 = vmor %vm97, %vm98
    %v100 = vsel %vm99, %v92, %v96
    %v101 = vand.u32 2147483647, %v91
    %vm102 = vcmp.eq.f32.partialorder %v101, 8.507059e+37
    %v103 = vand.u32 %v91, 2147483648
    %v104 = vor.u32 1.1754944e-38, %v103
    %v105 = vsel %vm102, %v104, %v100
    %v106 = vmul.f32 %v81, %v105
    %v107 = vmin.f32 %v106, 1.0
    %v108 = vmax.f32 %v107, -1.0
    %v109 = vadd.f32 %v68, 1.0
    %v110 = vadd.f32 %v108, 1.0
    %v111 = vmul.f32 %v109, 0.5
    %v112 = vmul.f32 %v110, 0.5
    %v113 = vmul.f32 %v25, %v111
    %v114 = vmul.f32 %v26, %v112
    %115 = vst [vmem:[#allocation5] sm:$0xff] %v113
    %116 = vst [vmem:[#allocation5 + $0x8] sm:$0xff] %v114
    // Predicated region
    $region10: #{tpu_custom_call.1} parent=1 // pred_check
      _
    $region11: #{tpu_custom_call.1} parent=1 // pred_check_branch
      %118 = sbr.rel (0) target = $region13
    $region12: #{tpu_custom_call.1} parent=1 // pred_region
      %120 = vsyncadd [#allocation4], 0
      %s121 = sshll.u32 [#allocation5], 4
      %s122 = int_to_ptr.vmem [resolvable:$true] %s121
      %s123 = sshll.u32 %s1, 4
      %s124 = int_to_ptr.hbm [resolvable:$true] %s123
      %129 = dma.vmem_to_hbm [thread:$0]  %s122, 256, %s124, [#allocation4], 128, 128, 8
    $region13: #{tpu_custom_call.1} parent=1 // pred_fallthru
      _
    // Predicated region
    $region14: #{tpu_custom_call.1} parent=1 // pred_check
      _
    $region15: #{tpu_custom_call.1} parent=1 // pred_check_branch
      %131 = sbr.rel (0) target = $region17
    $region16: #{tpu_custom_call.1} parent=1 // pred_region
      %133 = dma.done [#allocation4], 256
    $region17: #{tpu_custom_call.1} parent=1 // pred_fallthru
      _
    %134 = vsyncpa [#allocation3], 1
    %135 = vsyncpa [#allocation4], 1

</llo_original>
